<compile_context>
chip_gen: v6e
topology: v6e:2x2x1
jax: 0.10.0
libtpu: 0.0.40
codegen_flags: <defaults>
</compile_context>

<pallas_src>
import math

import jax
import jax.numpy as jnp
from jax.experimental import pallas as pl
from jax.experimental.pallas import tpu as pltpu

EPS = 1e-5  # nn.InstanceNorm1d default eps


def sinusoidal_pos_emb(t, num_steps, dim, rescale_steps=4000.0):
    """SinusoidalPosEmb.forward, plain JAX (glue).  Requires dim >= 4."""
    t = t.astype(jnp.float32) / float(num_steps) * float(rescale_steps)
    half = dim // 2
    scale = math.log(10000.0) / (half - 1)
    freqs = jnp.exp(jnp.arange(half, dtype=jnp.float32) * -scale)
    arg = t[:, None] * freqs[None, :]
    return jnp.concatenate([jnp.sin(arg), jnp.cos(arg)], axis=-1)  # (B, dim)


def _ada_ins_norm_kernel(mod_ref, x_ref, o_ref):
    # mod_ref: (TB, 2, TC)  -- [:,0,:]=scale, [:,1,:]=shift (already SiLU+Linear'd)
    # x_ref / o_ref: (TB, S, TC)
    x = x_ref[...]                                           # native dtype (f32/bf16)
    inv_s = 1.0 / x.shape[1]

    # One-pass statistics over the sequence axis, accumulated in f32 without
    # materializing an f32 copy of the whole tile (matters for bf16 inputs).
    s1 = jnp.sum(x, axis=1, dtype=jnp.float32)               # (TB, TC)
    s2 = jnp.sum(x * x, axis=1, dtype=jnp.float32)           # (TB, TC)
    mean = s1 * inv_s
    # Clamp: E[x^2]-E[x]^2 can go slightly negative from cancellation.
    var = jnp.maximum(s2 * inv_s - mean * mean, 0.0)         # biased var (InstanceNorm)

    mod = mod_ref[...].astype(jnp.float32)                   # (TB, 2, TC)
    scale = mod[:, 0, :]
    shift = mod[:, 1, :]

    # Folded modulation: out = x * a + c
    a = (1.0 + scale) * jax.lax.rsqrt(var + EPS)             # (TB, TC)
    c = shift - mean * a
    # TODO(synk): if the surrounding diffusion block applies a residual add /
    # gating right after AdaInsNorm, fuse it here to save a full HBM round trip.
    o_ref[...] = (x * a[:, None, :] + c[:, None, :]).astype(o_ref.dtype)


def _chip_info():
    """Chip-derived (vmem_capacity_bytes, is_multi_tensorcore)."""
    try:
        kind = jax.devices()[0].device_kind.lower()
    except Exception:  # pragma: no cover
        kind = ""
    try:
        vmem = int(pltpu.get_tpu_info().vmem_capacity_bytes)
    except Exception:  # pragma: no cover
        # Conservative fallback (v7x-sized VMEM).
        vmem = 64 * 1024 * 1024
    multi_tc = "v7" in kind  # v7x has 2 TensorCores per chip
    return vmem, multi_tc


def _choose_tiles(B, S, C, itemsize, target_bytes, multi_tc):
    """Pick (TB, TC): batch-rows and channel-lanes per grid step.

    Prefers whole-C tiles (TC=C) with the largest TB fitting `target_bytes`;
    falls back to lane-aligned channel tiling when one (1, S, C) row exceeds
    the budget.  On multi-TensorCore chips (v7x) it keeps >= 2 total grid
    steps (ideally >= 4) so both cores get work; on single-TC chips a problem
    fitting one tile runs as a single grid step (no pointless splitting).
    """
    row_bytes = S * C * itemsize
    b_divs = [d for d in range(1, B + 1) if B % d == 0]

    if row_bytes <= target_bytes:
        tc = C
        tb = max(d for d in b_divs if d * row_bytes <= target_bytes)
        if multi_tc and B >= 2:
            # Keep both TensorCores busy: prefer >= 4 total steps while tiles
            # stay >= ~1 MiB, and insist on >= 2 steps regardless.
            for min_steps, min_tile in ((4, 1 << 20), (2, 0)):
                if B // tb < min_steps:
                    cands = [d for d in b_divs
                             if B // d >= min_steps and d * row_bytes >= min_tile]
                    if cands:
                        tb = max(cands)
        return tb, tc

    # A single batch row does not fit: tile the channel axis (lane-aligned).
    tc_cands = [d for d in range(128, C + 1, 128)
                if C % d == 0 and S * d * itemsize <= target_bytes]
    if not tc_cands:
        raise ValueError(
            f"AdaInsNorm kernel: cannot tile (S={S}, C={C}, itemsize={itemsize}) "
            f"under a {target_bytes}-byte VMEM tile budget; need a lane-aligned "
            f"channel divisor of C that fits.")
    return 1, max(tc_cands)


def ada_ins_norm(x, timestep, w, b, num_steps):
    """AdaInsNorm.forward.

    x:        (B, S, C) float32 or bfloat16
    timestep: (B,) int32
    w:        (C, 2C) linear weight (applied as emb @ w), b: (2C,) bias
    """
    B, S, C = x.shape

    # --- tiny per-timestep path: sinusoidal emb -> SiLU -> Linear (plain JAX) ---
    emb = sinusoidal_pos_emb(timestep, num_steps, C)         # (B, C)
    h = emb * jax.nn.sigmoid(emb)                            # SiLU
    e = (h @ w + b).astype(jnp.float32)                      # (B, 2C)
    # torch.chunk(emb, 2, dim=2): [:, :C] = scale, [:, C:] = shift.
    # Fused into a single (B, 2, C) modulation tensor (one DMA per grid step).
    mod = e.reshape(B, 2, C)

    # --- chip-derived tile / VMEM budgets ---
    vmem_bytes, multi_tc = _chip_info()
    target_bytes = vmem_bytes // 12          # ~5 MiB on v7x, ~10 MiB on v5e/v6e
    vmem_limit = (3 * vmem_bytes) // 4       # 48 MiB on v7x, 96 MiB on v5e/v6e
    TB, TC = _choose_tiles(B, S, C, x.dtype.itemsize, target_bytes, multi_tc)
    grid = (B // TB, C // TC)

    out = pl.pallas_call(
        _ada_ins_norm_kernel,
        out_shape=jax.ShapeDtypeStruct((B, S, C), x.dtype),
        grid_spec=pltpu.PrefetchScalarGridSpec(
            num_scalar_prefetch=0,
            grid=grid,
            in_specs=[
                pl.BlockSpec((TB, 2, TC), lambda i, j: (i, 0, j)),   # scale+shift
                pl.BlockSpec((TB, S, TC), lambda i, j: (i, 0, j)),   # x
            ],
            out_specs=pl.BlockSpec((TB, S, TC), lambda i, j: (i, 0, j)),
        ),
        compiler_params=pltpu.CompilerParams(
            dimension_semantics=("parallel", "parallel"),
            vmem_limit_bytes=vmem_limit,
        ),
    )(mod, x)
    return out


def _reference(x, timestep, w, b, num_steps):
    """Pure-JAX reference mirroring the PyTorch forward."""
    B, S, C = x.shape
    emb = sinusoidal_pos_emb(timestep, num_steps, C)
    h = emb * jax.nn.sigmoid(emb)
    e = h @ w + b                                            # (B, 2C)
    scale, shift = e[:, None, :C], e[:, None, C:]
    xf = x.astype(jnp.float32)
    mean = jnp.mean(xf, axis=1, keepdims=True)
    var = jnp.mean((xf - mean) ** 2, axis=1, keepdims=True)
    norm = (xf - mean) / jnp.sqrt(var + EPS)
    return (norm * (1.0 + scale) + shift).astype(x.dtype)


if __name__ == "__main__":
    B, S, C = 4, 8, 128          # batch, seq, n_embd (C lane-dense: multiple of 128)
    MAX_TIMESTEP = 100

    key = jax.random.PRNGKey(0)
    kx, kw, kb, kt = jax.random.split(key, 4)

    x = jax.random.normal(kx, (B, S, C), dtype=jnp.float32)
    timestep = jax.random.randint(kt, (B,), 0, MAX_TIMESTEP, dtype=jnp.int32)

    # Deterministic synthetic parameters for nn.Linear(n_embd, 2*n_embd)
    w = jax.random.normal(kw, (C, 2 * C), dtype=jnp.float32) * (1.0 / math.sqrt(C))
    b = jax.random.normal(kb, (2 * C,), dtype=jnp.float32) * 0.01

    out = ada_ins_norm(x, timestep, w, b, MAX_TIMESTEP)
    out = jax.block_until_ready(out)

    ref = _reference(x, timestep, w, b, MAX_TIMESTEP)
    assert out.shape == (B, S, C)
    assert jnp.allclose(out, ref, atol=1e-4, rtol=1e-4), "mismatch vs reference"

    print("KERNEL_OK")
</pallas_src>

<mosaic_0001>
module attributes {stable_mosaic.version = 11 : i64} {
  func.func @_ada_ins_norm_kernel(%arg0: i32, %arg1: i32, %arg2: memref<4x2x128xf32, #tpu.memory_space<vmem>>, %arg3: memref<4x8x128xf32, #tpu.memory_space<vmem>>, %arg4: memref<4x8x128xf32, #tpu.memory_space<vmem>>) attributes {dimension_semantics = [#tpu.dimension_semantics<parallel>, #tpu.dimension_semantics<parallel>], iteration_bounds = array<i64: 1, 1>, scalar_prefetch = 0 : i64, scratch_operands = 0 : i64, tpu.core_type = #tpu.core_type<tc>, window_params = [{transform_indices = @transform_0, window_bounds = array<i64: 4, 2, 128>}, {transform_indices = @transform_1, window_bounds = array<i64: 4, 8, 128>}, {transform_indices = @transform_2, window_bounds = array<i64: 4, 8, 128>}]} {
    %c0 = arith.constant 0 : index
    %c0_0 = arith.constant 0 : index
    %c0_1 = arith.constant 0 : index
    %0 = vector.load %arg3[%c0, %c0_0, %c0_1] : memref<4x8x128xf32, #tpu.memory_space<vmem>>, vector<4x8x128xf32>
    %cst = arith.constant dense<0.000000e+00> : vector<4x128xf32>
    %1 = vector.multi_reduction <add>, %0, %cst [1] : vector<4x8x128xf32> to vector<4x128xf32>
    %2 = arith.mulf %0, %0 : vector<4x8x128xf32>
    %cst_2 = arith.constant dense<0.000000e+00> : vector<4x128xf32>
    %3 = vector.multi_reduction <add>, %2, %cst_2 [1] : vector<4x8x128xf32> to vector<4x128xf32>
    %cst_3 = arith.constant 1.250000e-01 : f32
    %4 = vector.broadcast %cst_3 : f32 to vector<4x128xf32>
    %5 = arith.mulf %1, %4 : vector<4x128xf32>
    %cst_4 = arith.constant 1.250000e-01 : f32
    %6 = vector.broadcast %cst_4 : f32 to vector<4x128xf32>
    %7 = arith.mulf %3, %6 : vector<4x128xf32>
    %8 = arith.mulf %5, %5 : vector<4x128xf32>
    %9 = arith.subf %7, %8 : vector<4x128xf32>
    %cst_5 = arith.constant 0.000000e+00 : f32
    %10 = vector.broadcast %cst_5 : f32 to vector<4x128xf32>
    %11 = arith.maximumf %9, %10 : vector<4x128xf32>
    %c0_6 = arith.constant 0 : index
    %c0_7 = arith.constant 0 : index
    %c0_8 = arith.constant 0 : index
    %12 = vector.load %arg2[%c0_6, %c0_7, %c0_8] : memref<4x2x128xf32, #tpu.memory_space<vmem>>, vector<4x2x128xf32>
    %13 = vector.extract_strided_slice %12 {offsets = [0, 0, 0], sizes = [4, 1, 128], strides = [1, 1, 1]} : vector<4x2x128xf32> to vector<4x1x128xf32>
    %14 = vector.shape_cast %13 : vector<4x1x128xf32> to vector<4x128xf32>
    %15 = vector.extract_strided_slice %12 {offsets = [0, 1, 0], sizes = [4, 1, 128], strides = [1, 1, 1]} : vector<4x2x128xf32> to vector<4x1x128xf32>
    %16 = vector.shape_cast %15 : vector<4x1x128xf32> to vector<4x128xf32>
    %cst_9 = arith.constant 1.000000e+00 : f32
    %17 = vector.broadcast %cst_9 : f32 to vector<4x128xf32>
    %18 = arith.addf %17, %14 : vector<4x128xf32>
    %cst_10 = arith.constant 9.99999974E-6 : f32
    %19 = vector.broadcast %cst_10 : f32 to vector<4x128xf32>
    %20 = arith.addf %11, %19 : vector<4x128xf32>
    %21 = math.rsqrt %20 : vector<4x128xf32>
    %22 = arith.mulf %18, %21 : vector<4x128xf32>
    %23 = arith.mulf %5, %22 : vector<4x128xf32>
    %24 = arith.subf %16, %23 : vector<4x128xf32>
    %25 = vector.shape_cast %22 : vector<4x128xf32> to vector<4x1x128xf32>
    %26 = vector.broadcast %25 : vector<4x1x128xf32> to vector<4x8x128xf32>
    %27 = arith.mulf %0, %26 : vector<4x8x128xf32>
    %28 = vector.shape_cast %24 : vector<4x128xf32> to vector<4x1x128xf32>
    %29 = vector.broadcast %28 : vector<4x1x128xf32> to vector<4x8x128xf32>
    %30 = arith.addf %27, %29 : vector<4x8x128xf32>
    %c0_11 = arith.constant 0 : index
    %c0_12 = arith.constant 0 : index
    %c0_13 = arith.constant 0 : index
    %31 = vector.load %arg4[%c0_11, %c0_12, %c0_13] : memref<4x8x128xf32, #tpu.memory_space<vmem>>, vector<4x8x128xf32>
    tpu.vector_store %arg4[%c0_11, %c0_12, %c0_13], %30 {strides = array<i32>} : memref<4x8x128xf32, #tpu.memory_space<vmem>>, vector<4x8x128xf32>,
    return
  }
  func.func @transform_0(%arg0: i32, %arg1: i32) -> (i32, i32, i32) {
    %c0_i32 = arith.constant 0 : i32
    %c0_i32_0 = arith.constant 0 : i32
    return %arg0, %c0_i32, %arg1 : i32, i32, i32
  }
  func.func @transform_1(%arg0: i32, %arg1: i32) -> (i32, i32, i32) {
    %c0_i32 = arith.constant 0 : i32
    %c0_i32_0 = arith.constant 0 : i32
    return %arg0, %c0_i32, %arg1 : i32, i32, i32
  }
  func.func @transform_2(%arg0: i32, %arg1: i32) -> (i32, i32, i32) {
    %c0_i32 = arith.constant 0 : i32
    %c0_i32_0 = arith.constant 0 : i32
    return %arg0, %c0_i32, %arg1 : i32, i32, i32
  }
}

</mosaic_0001>

<llo_original>
// kernel: tpu_custom_call.1
$region0: #{tpu_custom_call.1}
  #allocation0 [shape = 'u32[]', space=smem, size = 0x4, offset = 0x4, fixed_abs, tag = 'smem constant byte address 0x4 - core index']
  #allocation1 [shape = 'u32[144,128]{1,0:T(1,128)}', space=vmem, size = 0x12000, scoped, tag = 'internal scratch']
  %s0 = inlined_call_operand.hbm [shape: f32[4,2,128], index: 0, kind: input, shape index: {}]
  %s1 = inlined_call_operand.hbm [shape: f32[4,8,128], index: 1, kind: input, shape index: {}]
  %s2 = inlined_call_operand.hbm [shape: f32[4,8,128], index: 2, kind: output, shape index: {}]
  %s3 = sld [smem:[#allocation0]]
  $region26: #{tpu_custom_call.1} parent=0
    _
  %s5 = ssub.s32 1, %s3
  %s6 = scalar_select 0, %s5, %s3
  $region1: #{tpu_custom_call.1} parent=0
    #allocation2 [shape = 'u8[4096]{0}', space=vmem, size = 0x1000, scoped, tag = 'input window, operand 0, single buffered']
    #allocation3 [shape = 's32[1]{0}', space=sflag, size = 0x4, scoped, tag = 'scoped memory for tpu_custom_call.1']
    #allocation4 [shape = 's32[1]{0}', space=sflag, size = 0x4, scoped, tag = 'scoped memory for tpu_custom_call.1']
    #allocation5 [shape = 'u8[16384]{0}', space=vmem, size = 0x4000, scoped, tag = 'input window, operand 1, single buffered']
    #allocation6 [shape = 's32[1]{0}', space=sflag, size = 0x4, scoped, tag = 'scoped memory for tpu_custom_call.1']
    #allocation7 [shape = 'u8[16384]{0}', space=vmem, size = 0x4000, scoped, tag = 'output window, operand 0, single buffered']
    %7 = vsyncpa [#allocation3], 0
    %8 = vsyncpa [#allocation6], 0
    %9 = vsyncpa [#allocation4], 0
    // Predicated region
    $region2: #{tpu_custom_call.1} parent=1 // pred_check
      _
    $region3: #{tpu_custom_call.1} parent=1 // pred_check_branch
      %11 = sbr.rel (0) target = $region5
    $region4: #{tpu_custom_call.1} parent=1 // pred_region
      %s13 = ssub.s32 128, 128
      %14 = vsyncadd [#allocation3], %s13
      %s15 = sshll.u32 [#allocation2], 4
      %s16 = int_to_ptr.vmem [resolvable:$true] %s15
      %21 = dma.hbm_to_vmem [thread:$0]  %s0, 128, %s16, [#allocation3], 32, 32, 2
    $region5: #{tpu_custom_call.1} parent=1 // pred_fallthru
      _
    // Predicated region
    $region6: #{tpu_custom_call.1} parent=1 // pred_check
      _
    $region7: #{tpu_custom_call.1} parent=1 // pred_check_branch
      %23 = sbr.rel (0) target = $region9
    $region8: #{tpu_custom_call.1} parent=1 // pred_region
      %s25 = ssub.s32 512, 512
      %26 = vsyncadd [#allocation6], %s25
      %s27 = sshll.u32 [#allocation5], 4
      %s28 = int_to_ptr.vmem [resolvable:$true] %s27
      %33 = dma.hbm_to_vmem [thread:$0]  %s1, 512, %s28, [#allocation6], 128, 128, 8
    $region9: #{tpu_custom_call.1} parent=1 // pred_fallthru
      _
    // Predicated region
    $region10: #{tpu_custom_call.1} parent=1 // pred_check
      _
    $region11: #{tpu_custom_call.1} parent=1 // pred_check_branch
      %35 = sbr.rel (0) target = $region13
    $region12: #{tpu_custom_call.1} parent=1 // pred_region
      %36 = dma.done [#allocation3], 128
    $region13: #{tpu_custom_call.1} parent=1 // pred_fallthru
      _
    // Predicated region
    $region14: #{tpu_custom_call.1} parent=1 // pred_check
      _
    $region15: #{tpu_custom_call.1} parent=1 // pred_check_branch
      %38 = sbr.rel (0) target = $region17
    $region16: #{tpu_custom_call.1} parent=1 // pred_region
      %39 = dma.done [#allocation6], 512
    $region17: #{tpu_custom_call.1} parent=1 // pred_fallthru
      _
    %v40 = vld [vmem:[#allocation5] sm:$0xff]
    %v41 = vld [vmem:[#allocation5 + $0x8] sm:$0xff]
    %v42 = vld [vmem:[#allocation5 + $0x10] sm:$0xff]
    %v43 = vld [vmem:[#allocation5 + $0x18] sm:$0xff]
    %v44 = vrot.slane %v40, 4
    %v45 = vadd.f32 %v40, %v44
    %v46 = vrot.slane %v45, 2
    %v47 = vadd.f32 %v45, %v46
    %v48 = vrot.slane %v47, 1
    %v49 = vadd.f32 %v47, %v48
    %v50 = vrot.slane %v41, 4
    %v51 = vadd.f32 %v41, %v50
    %v52 = vrot.slane %v51, 2
    %v53 = vadd.f32 %v51, %v52
    %v54 = vrot.slane %v53, 1
    %v55 = vadd.f32 %v53, %v54
    %v56 = vrot.slane %v42, 4
    %v57 = vadd.f32 %v42, %v56
    %v58 = vrot.slane %v57, 2
    %v59 = vadd.f32 %v57, %v58
    %v60 = vrot.slane %v59, 1
    %v61 = vadd.f32 %v59, %v60
    %v62 = vrot.slane %v43, 4
    %v63 = vadd.f32 %v43, %v62
    %v64 = vrot.slane %v63, 2
    %v65 = vadd.f32 %v63, %v64
    %v66 = vrot.slane %v65, 1
    %v67 = vadd.f32 %v65, %v66
    %v68 = vmul.f32 %v40, %v40
    %v69 = vmul.f32 %v41, %v41
    %v70 = vmul.f32 %v42, %v42
    %v71 = vmul.f32 %v43, %v43
    %v72 = vrot.slane %v68, 4
    %v73 = vadd.f32 %v68, %v72
    %v74 = vrot.slane %v73, 2
    %v75 = vadd.f32 %v73, %v74
    %v76 = vrot.slane %v75, 1
    %v77 = vadd.f32 %v75, %v76
    %v78 = vrot.slane %v69, 4
    %v79 = vadd.f32 %v69, %v78
    %v80 = vrot.slane %v79, 2
    %v81 = vadd.f32 %v79, %v80
    %v82 = vrot.slane %v81, 1
    %v83 = vadd.f32 %v81, %v82
    %v84 = vrot.slane %v70, 4
    %v85 = vadd.f32 %v70, %v84
    %v86 = vrot.slane %v85, 2
    %v87 = vadd.f32 %v85, %v86
    %v88 = vrot.slane %v87, 1
    %v89 = vadd.f32 %v87, %v88
    %v90 = vrot.slane %v71, 4
    %v91 = vadd.f32 %v71, %v90
    %v92 = vrot.slane %v91, 2
    %v93 = vadd.f32 %v91, %v92
    %v94 = vrot.slane %v93, 1
    %v95 = vadd.f32 %v93, %v94
    %v96 = vmul.f32 %v49, 0.125
    %v97 = vmul.f32 %v55, 0.125
    %v98 = vmul.f32 %v61, 0.125
    %v99 = vmul.f32 %v67, 0.125
    %v100 = vmul.f32 %v77, 0.125
    %v101 = vmul.f32 %v83, 0.125
    %v102 = vmul.f32 %v89, 0.125
    %v103 = vmul.f32 %v95, 0.125
    %v104 = vmul.f32 %v96, %v96
    %v105 = vmul.f32 %v97, %v97
    %v106 = vmul.f32 %v98, %v98
    %v107 = vmul.f32 %v99, %v99
    %v108 = vsub.f32 %v100, %v104
    %v109 = vsub.f32 %v101, %v105
    %v110 = vsub.f32 %v102, %v106
    %v111 = vsub.f32 %v103, %v107
    %v112 = vmax.f32 %v108, 0.0
    %v113 = vmax.f32 %v109, 0.0
    %v114 = vmax.f32 %v110, 0.0
    %v115 = vmax.f32 %v111, 0.0
    %v116 = vld [vmem:[#allocation2] sm:$0x3]
    %v117 = vld [vmem:[#allocation2 + $0x2] sm:$0x3]
    %v118 = vld [vmem:[#allocation2 + $0x4] sm:$0x3]
    %v119 = vld [vmem:[#allocation2 + $0x6] sm:$0x3]
    %v120 = vadd.f32 %v116, 1.0
    %v121 = vadd.f32 %v117, 1.0
    %v122 = vadd.f32 %v118, 1.0
    %v123 = vadd.f32 %v119, 1.0
    %v124 = vadd.f32 %v112, 1e-05
    %v125 = vadd.f32 %v113, 1e-05
    %v126 = vadd.f32 %v114, 1e-05
    %v127 = vadd.f32 %v115, 1e-05
    %v128 = vrsqrt.pop %v124
    %v129 = vrsqrt.pop %v125
    %v130 = vrsqrt.pop %v126
    %v131 = vrsqrt.pop %v127
    %v132 = vmul.f32 %v120, %v128
    %v133 = vmul.f32 %v121, %v129
    %v134 = vmul.f32 %v122, %v130
    %v135 = vmul.f32 %v123, %v131
    %v136 = vmul.f32 %v96, %v132
    %v137 = vmul.f32 %v97, %v133
    %v138 = vmul.f32 %v98, %v134
    %v139 = vmul.f32 %v99, %v135
    %v144 = vrot.slane %v136, 7
    %v145 = vrot.slane %v137, 7
    %v146 = vrot.slane %v138, 7
    %v147 = vrot.slane %v139, 7
    %v152 = vsub.f32 %v116, %v144
    %v153 = vsub.f32 %v117, %v145
    %v154 = vsub.f32 %v118, %v146
    %v155 = vsub.f32 %v119, %v147
    %v156 = vlaneseq
    %v157 = vshrl.u32 %v156, 7
    %v158 = vsub.s32 0, %v157
    %v159 = vrot.slane %v132, %v158
    %v160 = vlaneseq
    %v161 = vshrl.u32 %v160, 7
    %v162 = vsub.s32 0, %v161
    %v163 = vrot.slane %v133, %v162
    %v164 = vlaneseq
    %v165 = vshrl.u32 %v164, 7
    %v166 = vsub.s32 0, %v165
    %v167 = vrot.slane %v134, %v166
    %v168 = vlaneseq
    %v169 = vshrl.u32 %v168, 7
    %v170 = vsub.s32 0, %v169
    %v171 = vrot.slane %v135, %v170
    %v172 = vmul.f32 %v40, %v159
    %v173 = vmul.f32 %v41, %v163
    %v174 = vmul.f32 %v42, %v167
    %v175 = vmul.f32 %v43, %v171
    %v176 = vlaneseq
    %v177 = vshrl.u32 %v176, 7
    %v178 = vsub.s32 1, %v177
    %v179 = vrot.slane %v152, %v178
    %v180 = vlaneseq
    %v181 = vshrl.u32 %v180, 7
    %v182 = vsub.s32 1, %v181
    %v183 = vrot.slane %v153, %v182
    %v184 = vlaneseq
    %v185 = vshrl.u32 %v184, 7
    %v186 = vsub.s32 1, %v185
    %v187 = vrot.slane %v154, %v186
    %v188 = vlaneseq
    %v189 = vshrl.u32 %v188, 7
    %v190 = vsub.s32 1, %v189
    %v191 = vrot.slane %v155, %v190
    %v192 = vadd.f32 %v172, %v179
    %v193 = vadd.f32 %v173, %v183
    %v194 = vadd.f32 %v174, %v187
    %v195 = vadd.f32 %v175, %v191
    %196 = vst [vmem:[#allocation7] sm:$0xff] %v192
    %197 = vst [vmem:[#allocation7 + $0x8] sm:$0xff] %v193
    %198 = vst [vmem:[#allocation7 + $0x10] sm:$0xff] %v194
    %199 = vst [vmem:[#allocation7 + $0x18] sm:$0xff] %v195
    // Predicated region
    $region18: #{tpu_custom_call.1} parent=1 // pred_check
      _
    $region19: #{tpu_custom_call.1} parent=1 // pred_check_branch
      %201 = sbr.rel (0) target = $region21
    $region20: #{tpu_custom_call.1} parent=1 // pred_region
      %s203 = ssub.s32 512, 512
      %204 = vsyncadd [#allocation4], %s203
      %s205 = sshll.u32 [#allocation7], 4
      %s206 = int_to_ptr.vmem [resolvable:$true] %s205
      %211 = dma.vmem_to_hbm [thread:$0]  %s206, 512, %s2, [#allocation4], 128, 128, 8
    $region21: #{tpu_custom_call.1} parent=1 // pred_fallthru
      _
    // Predicated region
    $region22: #{tpu_custom_call.1} parent=1 // pred_check
      _
    $region23: #{tpu_custom_call.1} parent=1 // pred_check_branch
      %213 = sbr.rel (0) target = $region25
    $region24: #{tpu_custom_call.1} parent=1 // pred_region
      %214 = dma.done [#allocation4], 512
    $region25: #{tpu_custom_call.1} parent=1 // pred_fallthru
      _
    %215 = vsyncpa [#allocation3], 1
    %216 = vsyncpa [#allocation6], 1
    %217 = vsyncpa [#allocation4], 1

</llo_original>
